<compile_context>
chip_gen: v7x
topology: tpu7x:2x2x1
jax: 0.10.0
libtpu: 0.0.40
codegen_flags: <defaults>
</compile_context>

<pallas_src>
import functools

import numpy as np
import jax
import jax.numpy as jnp
from jax.experimental import pallas as pl
from jax.experimental.pallas import tpu as pltpu

DIM = 10          # deminsion
TOPK = 10         # topK_Position
P_HID = 14        # propensity_hidden_layer
R_HID = 12        # relevance_hidden_layer
HID_P = 32        # fused hidden width (14 + 12 = 26, padded to 32 for aligned slices)
LANE = 128        # lane width of click / loss slabs
XCOL = 16         # padded last dim of x / y / pred slabs (>= DIM, TOPK)
OUT_W = 4 * LANE  # fused final output: [prop | rel | rel^T | prop_exp]
KK = TOPK * TOPK  # 100
NEG_SLOPE = 0.01  # torch leaky_relu default
N_HIDDEN = 6      # hidden layers 2..7 of each tower


def _leaky(v):
    return jnp.maximum(v, NEG_SLOPE * v)


def _sigmoid(v):
    # exp + approx reciprocal both live on the EUP (slack unit); ~1e-3 rel err
    return pl.reciprocal(1.0 + jnp.exp(-v), approx=True)


def _net_kernel(x_ref, y_ref, click_ref, nclick_ref,
                w_in_ref, b_in_ref, w_hid_ref, b_hid_ref,
                w_out_ref, b_out_ref,
                stats_ref, pred_ref, *, batch, block):
    # ---- fused propensity+relevance towers (block-diagonal hidden weights) --
    # bf16 operands, f32 accumulation on the MXU.
    h = jnp.dot(x_ref[...], w_in_ref[...], preferred_element_type=jnp.float32)
    h = _leaky(h + b_in_ref[...])                                  # (BT, 32) f32
    for l in range(N_HIDDEN):
        w = w_hid_ref[l * HID_P:(l + 1) * HID_P, :]                # (32, 32) bf16
        b = b_hid_ref[l:l + 1, :]                                  # (1, 32) f32
        h = _leaky(jnp.dot(h.astype(jnp.bfloat16), w,
                           preferred_element_type=jnp.float32) + b)
    z = jnp.dot(h.astype(jnp.bfloat16), w_out_ref[...],
                preferred_element_type=jnp.float32) + b_out_ref[...]   # (BT, 512)
    out = _sigmoid(z)

    # P / E folded offline into w_out/b_out -> slice the four 128-lane slabs.
    prop = out[:, :XCOL]                    # lanes 0..9 valid (rest sigmoid(0)=0.5)
    rel = out[:, LANE:2 * LANE]             # flat m = i*K + j, lanes 0..99 valid
    rel_t = out[:, 2 * LANE:3 * LANE]       # rel transposed (permutation folded)
    prop_exp = out[:, 3 * LANE:]            # prop broadcast over j (E folded)

    sym = (rel + rel_t) * 0.5
    exam = jnp.clip(prop_exp * sym, 1e-6, 1.0 - 1e-6)

    # padded rows / padded lanes have click == not_click == 0 -> contribute 0
    ll = (jnp.log(exam) * click_ref[...].astype(jnp.float32)
          + jnp.log(1.0 - exam) * nclick_ref[...].astype(jnp.float32))
    lsum = jnp.sum(jnp.sum(ll, axis=1, keepdims=True), axis=0, keepdims=True)  # (1,1)

    # pred is consumed downstream -> exact division (not approx reciprocal)
    pred = prop / prop[:, 0:1]                                     # (BT, 16)
    pred_ref[...] = pred

    # err only over valid rows (< batch) and the first TOPK lanes
    rows = pl.program_id(0) * block + jax.lax.broadcasted_iota(
        jnp.int32, (block, XCOL), 0)
    lanes = jax.lax.broadcasted_iota(jnp.int32, (block, XCOL), 1)
    valid = (rows < batch) & (lanes < TOPK)
    e = jnp.where(
        valid,
        jnp.abs((y_ref[...] - pred) * pl.reciprocal(y_ref[...], approx=True)),
        0.0)
    esum = jnp.sum(jnp.sum(e, axis=1, keepdims=True), axis=0, keepdims=True)   # (1,1)

    # per-block partial sums: row 0 lane 0 = -loss-sum, lane 1 = err-sum
    sub = jax.lax.broadcasted_iota(jnp.int32, (8, LANE), 0)
    lane = jax.lax.broadcasted_iota(jnp.int32, (8, LANE), 1)
    stats_ref[...] = (jnp.where((sub == 0) & (lane == 0), -lsum, 0.0)
                      + jnp.where((sub == 0) & (lane == 1), esum, 0.0))


def make_params(key, dim=DIM, topk=TOPK, p_hid=P_HID, r_hid=R_HID):
    """Deterministic params mimicking torch.nn.Linear default init.
    Weights returned pre-transposed as (in, out); biases as (1, out)."""
    sizes = ([(dim, p_hid)] + [(p_hid, p_hid)] * 6 + [(p_hid, topk)] +
             [(dim, r_hid)] + [(r_hid, r_hid)] * 6 + [(r_hid, topk * topk)])
    params = []
    for fan_in, fan_out in sizes:
        key, kw, kb = jax.random.split(key, 3)
        bound = 1.0 / float(np.sqrt(fan_in))
        w = jax.random.uniform(kw, (fan_in, fan_out), jnp.float32, -bound, bound)
        b = jax.random.uniform(kb, (1, fan_out), jnp.float32, -bound, bound)
        params += [w, b]
    return params


def pack_params(params):
    """Pack 32 (W,b) tensors into 6 fused slabs; P/E are folded into w_out."""
    w_in = np.zeros((XCOL, HID_P), np.float32)
    w_in[:DIM, :P_HID] = np.asarray(params[0])                 # prop layer1
    w_in[:DIM, P_HID:P_HID + R_HID] = np.asarray(params[16])   # rel  layer1
    b_in = np.zeros((1, HID_P), np.float32)
    b_in[0, :P_HID] = np.asarray(params[1]).ravel()
    b_in[0, P_HID:P_HID + R_HID] = np.asarray(params[17]).ravel()

    w_hid = np.zeros((N_HIDDEN * HID_P, HID_P), np.float32)    # block-diagonal
    b_hid = np.zeros((N_HIDDEN, HID_P), np.float32)
    for l in range(N_HIDDEN):
        r0 = l * HID_P
        w_hid[r0:r0 + P_HID, :P_HID] = np.asarray(params[2 * (l + 1)])
        w_hid[r0 + P_HID:r0 + P_HID + R_HID,
              P_HID:P_HID + R_HID] = np.asarray(params[2 * (l + 9)])
        b_hid[l, :P_HID] = np.asarray(params[2 * (l + 1) + 1]).ravel()
        b_hid[l, P_HID:P_HID + R_HID] = np.asarray(params[2 * (l + 9) + 1]).ravel()

    w_prop = np.asarray(params[14])            # (14, 10)
    b_prop = np.asarray(params[15]).ravel()    # (10,)
    w_rel = np.asarray(params[30])             # (12, 100)
    b_rel = np.asarray(params[31]).ravel()     # (100,)

    idx = np.arange(KK)
    t_idx = (idx % TOPK) * TOPK + (idx // TOPK)   # flat (i,j) -> (j,i) source col
    dup = idx // TOPK                             # prop column i for flat m=i*K+j

    # fused final layer: sigmoid commutes with column permutation / duplication,
    # so rel^T and prop_exp are emitted directly (no in-kernel P/E matmuls).
    w_out = np.zeros((HID_P, OUT_W), np.float32)
    b_out = np.zeros((1, OUT_W), np.float32)
    w_out[:P_HID, 0:TOPK] = w_prop                               # slab 0: prop
    b_out[0, 0:TOPK] = b_prop
    w_out[P_HID:P_HID + R_HID, LANE:LANE + KK] = w_rel           # slab 1: rel
    b_out[0, LANE:LANE + KK] = b_rel
    w_out[P_HID:P_HID + R_HID, 2 * LANE:2 * LANE + KK] = w_rel[:, t_idx]  # slab 2: rel^T
    b_out[0, 2 * LANE:2 * LANE + KK] = b_rel[t_idx]
    w_out[:P_HID, 3 * LANE:3 * LANE + KK] = w_prop[:, dup]       # slab 3: prop_exp
    b_out[0, 3 * LANE:3 * LANE + KK] = b_prop[dup]

    return (jnp.asarray(w_in, jnp.bfloat16), jnp.asarray(b_in, jnp.float32),
            jnp.asarray(w_hid, jnp.bfloat16), jnp.asarray(b_hid, jnp.float32),
            jnp.asarray(w_out, jnp.bfloat16), jnp.asarray(b_out, jnp.float32))


def _pad2d(a, rows, cols, fill=0.0):
    return jnp.pad(a, ((0, rows - a.shape[0]), (0, cols - a.shape[1])),
                   constant_values=fill)


def net_forward(x, y, click, not_click, packed, topk=TOPK, block_cap=1024):
    B = x.shape[0]
    # bf16 operands -> BT a multiple of 16 (sublane packing).  block_cap=1024
    # keeps the tile far below VMEM limits on every generation while amortising
    # per-step overhead and weight reloads; for B > block_cap the grid has >= 2
    # blocks so both v7x TensorCores get work with the "parallel" batch axis.
    BT = min(block_cap, ((B + 15) // 16) * 16)
    B_pad = ((B + BT - 1) // BT) * BT
    nblk = B_pad // BT

    # TODO(synk): these pad/reshape passes should be produced upstream in a real
    # pipeline (they cost an extra HBM pass over the inputs before the kernel).
    x_p = _pad2d(x.astype(jnp.bfloat16), B_pad, XCOL, 0.0)
    y_p = _pad2d(y.astype(jnp.float32), B_pad, XCOL, 1.0)          # 1.0 avoids 0-div
    click_p = _pad2d(click.reshape(B, KK).astype(jnp.bfloat16), B_pad, LANE, 0.0)
    nclick_p = _pad2d(not_click.reshape(B, KK).astype(jnp.bfloat16), B_pad, LANE, 0.0)

    w_in, b_in, w_hid, b_hid, w_out, b_out = packed

    kernel = functools.partial(_net_kernel, batch=B, block=BT)

    xrow_spec = pl.BlockSpec((BT, XCOL), lambda i: (i, 0))
    crow_spec = pl.BlockSpec((BT, LANE), lambda i: (i, 0))

    def const_spec(shape):
        nd = len(shape)
        return pl.BlockSpec(shape, lambda i, _nd=nd: (0,) * _nd)

    in_specs = [xrow_spec, xrow_spec, crow_spec, crow_spec,
                const_spec(w_in.shape), const_spec(b_in.shape),
                const_spec(w_hid.shape), const_spec(b_hid.shape),
                const_spec(w_out.shape), const_spec(b_out.shape)]
    out_specs = (pl.BlockSpec((8, LANE), lambda i: (i, 0)),        # per-block stats
                 pl.BlockSpec((BT, XCOL), lambda i: (i, 0)))       # pred slab
    out_shape = (jax.ShapeDtypeStruct((nblk * 8, LANE), jnp.float32),
                 jax.ShapeDtypeStruct((B_pad, XCOL), jnp.float32))

    stats, pred_pad = pl.pallas_call(
        kernel,
        out_shape=out_shape,
        grid=(nblk,),
        in_specs=in_specs,
        out_specs=out_specs,
        compiler_params=pltpu.CompilerParams(
            dimension_semantics=("parallel",),
            vmem_limit_bytes=32 * 1024 * 1024),
    )(x_p, y_p, click_p, nclick_p, w_in, b_in, w_hid, b_hid, w_out, b_out)

    loss = jnp.sum(stats[:, 0])
    err = jnp.sum(stats[:, 1])
    pred = pred_pad[:B, :topk]
    return loss, err, pred


def ref_forward(x, y, click, not_click, params, topk=TOPK):
    """Plain-JAX reference mirroring the PyTorch forward."""
    h = x
    for i in range(7):
        h = _leaky(h @ params[2 * i] + params[2 * i + 1])
    prop = jax.nn.sigmoid(h @ params[14] + params[15])
    h = x
    for i in range(8, 15):
        h = _leaky(h @ params[2 * i] + params[2 * i + 1])
    rel = jax.nn.sigmoid(h @ params[30] + params[31]).reshape(-1, topk, topk)
    sym = (rel + jnp.transpose(rel, (0, 2, 1))) / 2.0
    exam = jnp.clip(prop[:, :, None] * sym, 1e-6, 1.0 - 1e-6)
    loss = -jnp.sum(jnp.log(exam) * click + jnp.log(1.0 - exam) * not_click)
    pred = prop / prop[:, 0:1]
    err = jnp.sum(jnp.abs((y - pred) / y))
    return loss, err, pred


if __name__ == "__main__":
    key = jax.random.PRNGKey(0)
    kp, kd = jax.random.split(key)
    params = make_params(kp)
    packed = pack_params(params)

    # single-block case and a multi-block case (small block_cap exercises the
    # grid / padding / masking path while keeping shapes small)
    for B, cap in ((4, 1024), (40, 16)):
        kd, kx, ky, kc = jax.random.split(kd, 4)
        x = jax.random.normal(kx, (B, DIM), jnp.float32)
        y = jax.random.uniform(ky, (B, TOPK), jnp.float32, 0.2, 1.0)
        click = (jax.random.uniform(kc, (B, TOPK, TOPK)) < 0.3).astype(jnp.float32)
        not_click = 1.0 - click

        loss, err, pred = net_forward(x, y, click, not_click, packed,
                                      block_cap=cap)
        jax.block_until_ready((loss, err, pred))

        loss_r, err_r, pred_r = ref_forward(x, y, click, not_click, params)
        np.testing.assert_allclose(np.asarray(loss), np.asarray(loss_r),
                                   rtol=5e-2, atol=5e-2)
        np.testing.assert_allclose(np.asarray(err), np.asarray(err_r),
                                   rtol=5e-2, atol=5e-2)
        np.testing.assert_allclose(np.asarray(pred), np.asarray(pred_r),
                                   rtol=5e-2, atol=5e-2)

    print("KERNEL_OK")
</pallas_src>

<mosaic_0001>
module attributes {stable_mosaic.version = 11 : i64} {
  func.func @_net_kernel(%arg0: i32, %arg1: memref<16x16xbf16, #tpu.memory_space<vmem>>, %arg2: memref<16x16xf32, #tpu.memory_space<vmem>>, %arg3: memref<16x128xbf16, #tpu.memory_space<vmem>>, %arg4: memref<16x128xbf16, #tpu.memory_space<vmem>>, %arg5: memref<16x32xbf16, #tpu.memory_space<vmem>>, %arg6: memref<1x32xf32, #tpu.memory_space<vmem>>, %arg7: memref<192x32xbf16, #tpu.memory_space<vmem>>, %arg8: memref<6x32xf32, #tpu.memory_space<vmem>>, %arg9: memref<32x512xbf16, #tpu.memory_space<vmem>>, %arg10: memref<1x512xf32, #tpu.memory_space<vmem>>, %arg11: memref<8x128xf32, #tpu.memory_space<vmem>>, %arg12: memref<16x16xf32, #tpu.memory_space<vmem>>) attributes {dimension_semantics = [#tpu.dimension_semantics<parallel>], iteration_bounds = array<i64: 1>, scalar_prefetch = 0 : i64, scratch_operands = 0 : i64, tpu.core_type = #tpu.core_type<tc>, window_params = [{transform_indices = @transform_0, window_bounds = array<i64: 16, 16>}, {transform_indices = @transform_1, window_bounds = array<i64: 16, 16>}, {transform_indices = @transform_2, window_bounds = array<i64: 16, 128>}, {transform_indices = @transform_3, window_bounds = array<i64: 16, 128>}, {pipeline_mode = #tpu.pipeline_mode<synchronous>, transform_indices = @transform_4, window_bounds = array<i64: 16, 32>}, {pipeline_mode = #tpu.pipeline_mode<synchronous>, transform_indices = @transform_5, window_bounds = array<i64: 1, 32>}, {pipeline_mode = #tpu.pipeline_mode<synchronous>, transform_indices = @transform_6, window_bounds = array<i64: 192, 32>}, {pipeline_mode = #tpu.pipeline_mode<synchronous>, transform_indices = @transform_7, window_bounds = array<i64: 6, 32>}, {pipeline_mode = #tpu.pipeline_mode<synchronous>, transform_indices = @transform_8, window_bounds = array<i64: 32, 512>}, {pipeline_mode = #tpu.pipeline_mode<synchronous>, transform_indices = @transform_9, window_bounds = array<i64: 1, 512>}, {transform_indices = @transform_10, window_bounds = array<i64: 8, 128>}, {transform_indices = @transform_11, window_bounds = array<i64: 16, 16>}]} {
    %c0 = arith.constant 0 : index
    %c0_0 = arith.constant 0 : index
    %0 = vector.load %arg1[%c0, %c0_0] : memref<16x16xbf16, #tpu.memory_space<vmem>>, vector<16x16xbf16>
    %c0_1 = arith.constant 0 : index
    %c0_2 = arith.constant 0 : index
    %1 = vector.load %arg5[%c0_1, %c0_2] : memref<16x32xbf16, #tpu.memory_space<vmem>>, vector<16x32xbf16>
    %cst = arith.constant dense<0.000000e+00> : vector<16x32xf32>
    %2 = tpu.matmul %0, %1, %cst {dimension_numbers = #tpu.dot_dimension_numbers<[1], [0], [0], [1], [0, 0, 1, 1], [], []>} : vector<16x16xbf16>, vector<16x32xbf16>, vector<16x32xf32> -> vector<16x32xf32>
    %c0_3 = arith.constant 0 : index
    %c0_4 = arith.constant 0 : index
    %3 = vector.load %arg6[%c0_3, %c0_4] : memref<1x32xf32, #tpu.memory_space<vmem>>, vector<1x32xf32>
    %4 = vector.broadcast %3 : vector<1x32xf32> to vector<16x32xf32>
    %5 = arith.addf %2, %4 : vector<16x32xf32>
    %cst_5 = arith.constant 0.00999999977 : f32
    %6 = vector.broadcast %cst_5 : f32 to vector<16x32xf32>
    %7 = arith.mulf %6, %5 : vector<16x32xf32>
    %8 = arith.maximumf %5, %7 : vector<16x32xf32>
    %c0_6 = arith.constant 0 : index
    %c0_7 = arith.constant 0 : index
    %9 = vector.load %arg7[%c0_6, %c0_7] : memref<192x32xbf16, #tpu.memory_space<vmem>>, vector<32x32xbf16>
    %c0_8 = arith.constant 0 : index
    %c0_9 = arith.constant 0 : index
    %10 = vector.load %arg8[%c0_8, %c0_9] : memref<6x32xf32, #tpu.memory_space<vmem>>, vector<1x32xf32>
    %11 = arith.truncf %8 : vector<16x32xf32> to vector<16x32xbf16>
    %cst_10 = arith.constant dense<0.000000e+00> : vector<16x32xf32>
    %12 = tpu.matmul %11, %9, %cst_10 {dimension_numbers = #tpu.dot_dimension_numbers<[1], [0], [0], [1], [0, 0, 1, 1], [], []>} : vector<16x32xbf16>, vector<32x32xbf16>, vector<16x32xf32> -> vector<16x32xf32>
    %13 = vector.broadcast %10 : vector<1x32xf32> to vector<16x32xf32>
    %14 = arith.addf %12, %13 : vector<16x32xf32>
    %cst_11 = arith.constant 0.00999999977 : f32
    %15 = vector.broadcast %cst_11 : f32 to vector<16x32xf32>
    %16 = arith.mulf %15, %14 : vector<16x32xf32>
    %17 = arith.maximumf %14, %16 : vector<16x32xf32>
    %c32 = arith.constant 32 : index
    %c0_12 = arith.constant 0 : index
    %18 = vector.load %arg7[%c32, %c0_12] : memref<192x32xbf16, #tpu.memory_space<vmem>>, vector<32x32xbf16>
    %c1 = arith.constant 1 : index
    %c0_13 = arith.constant 0 : index
    %19 = vector.load %arg8[%c1, %c0_13] : memref<6x32xf32, #tpu.memory_space<vmem>>, vector<1x32xf32>
    %20 = arith.truncf %17 : vector<16x32xf32> to vector<16x32xbf16>
    %cst_14 = arith.constant dense<0.000000e+00> : vector<16x32xf32>
    %21 = tpu.matmul %20, %18, %cst_14 {dimension_numbers = #tpu.dot_dimension_numbers<[1], [0], [0], [1], [0, 0, 1, 1], [], []>} : vector<16x32xbf16>, vector<32x32xbf16>, vector<16x32xf32> -> vector<16x32xf32>
    %22 = vector.broadcast %19 : vector<1x32xf32> to vector<16x32xf32>
    %23 = arith.addf %21, %22 : vector<16x32xf32>
    %cst_15 = arith.constant 0.00999999977 : f32
    %24 = vector.broadcast %cst_15 : f32 to vector<16x32xf32>
    %25 = arith.mulf %24, %23 : vector<16x32xf32>
    %26 = arith.maximumf %23, %25 : vector<16x32xf32>
    %c64 = arith.constant 64 : index
    %c0_16 = arith.constant 0 : index
    %27 = vector.load %arg7[%c64, %c0_16] : memref<192x32xbf16, #tpu.memory_space<vmem>>, vector<32x32xbf16>
    %c2 = arith.constant 2 : index
    %c0_17 = arith.constant 0 : index
    %28 = vector.load %arg8[%c2, %c0_17] : memref<6x32xf32, #tpu.memory_space<vmem>>, vector<1x32xf32>
    %29 = arith.truncf %26 : vector<16x32xf32> to vector<16x32xbf16>
    %cst_18 = arith.constant dense<0.000000e+00> : vector<16x32xf32>
    %30 = tpu.matmul %29, %27, %cst_18 {dimension_numbers = #tpu.dot_dimension_numbers<[1], [0], [0], [1], [0, 0, 1, 1], [], []>} : vector<16x32xbf16>, vector<32x32xbf16>, vector<16x32xf32> -> vector<16x32xf32>
    %31 = vector.broadcast %28 : vector<1x32xf32> to vector<16x32xf32>
    %32 = arith.addf %30, %31 : vector<16x32xf32>
    %cst_19 = arith.constant 0.00999999977 : f32
    %33 = vector.broadcast %cst_19 : f32 to vector<16x32xf32>
    %34 = arith.mulf %33, %32 : vector<16x32xf32>
    %35 = arith.maximumf %32, %34 : vector<16x32xf32>
    %c96 = arith.constant 96 : index
    %c0_20 = arith.constant 0 : index
    %36 = vector.load %arg7[%c96, %c0_20] : memref<192x32xbf16, #tpu.memory_space<vmem>>, vector<32x32xbf16>
    %c3 = arith.constant 3 : index
    %c0_21 = arith.constant 0 : index
    %37 = vector.load %arg8[%c3, %c0_21] : memref<6x32xf32, #tpu.memory_space<vmem>>, vector<1x32xf32>
    %38 = arith.truncf %35 : vector<16x32xf32> to vector<16x32xbf16>
    %cst_22 = arith.constant dense<0.000000e+00> : vector<16x32xf32>
    %39 = tpu.matmul %38, %36, %cst_22 {dimension_numbers = #tpu.dot_dimension_numbers<[1], [0], [0], [1], [0, 0, 1, 1], [], []>} : vector<16x32xbf16>, vector<32x32xbf16>, vector<16x32xf32> -> vector<16x32xf32>
    %40 = vector.broadcast %37 : vector<1x32xf32> to vector<16x32xf32>
    %41 = arith.addf %39, %40 : vector<16x32xf32>
    %cst_23 = arith.constant 0.00999999977 : f32
    %42 = vector.broadcast %cst_23 : f32 to vector<16x32xf32>
    %43 = arith.mulf %42, %41 : vector<16x32xf32>
    %44 = arith.maximumf %41, %43 : vector<16x32xf32>
    %c128 = arith.constant 128 : index
    %c0_24 = arith.constant 0 : index
    %45 = vector.load %arg7[%c128, %c0_24] : memref<192x32xbf16, #tpu.memory_space<vmem>>, vector<32x32xbf16>
    %c4 = arith.constant 4 : index
    %c0_25 = arith.constant 0 : index
    %46 = vector.load %arg8[%c4, %c0_25] : memref<6x32xf32, #tpu.memory_space<vmem>>, vector<1x32xf32>
    %47 = arith.truncf %44 : vector<16x32xf32> to vector<16x32xbf16>
    %cst_26 = arith.constant dense<0.000000e+00> : vector<16x32xf32>
    %48 = tpu.matmul %47, %45, %cst_26 {dimension_numbers = #tpu.dot_dimension_numbers<[1], [0], [0], [1], [0, 0, 1, 1], [], []>} : vector<16x32xbf16>, vector<32x32xbf16>, vector<16x32xf32> -> vector<16x32xf32>
    %49 = vector.broadcast %46 : vector<1x32xf32> to vector<16x32xf32>
    %50 = arith.addf %48, %49 : vector<16x32xf32>
    %cst_27 = arith.constant 0.00999999977 : f32
    %51 = vector.broadcast %cst_27 : f32 to vector<16x32xf32>
    %52 = arith.mulf %51, %50 : vector<16x32xf32>
    %53 = arith.maximumf %50, %52 : vector<16x32xf32>
    %c160 = arith.constant 160 : index
    %c0_28 = arith.constant 0 : index
    %54 = vector.load %arg7[%c160, %c0_28] : memref<192x32xbf16, #tpu.memory_space<vmem>>, vector<32x32xbf16>
    %c5 = arith.constant 5 : index
    %c0_29 = arith.constant 0 : index
    %55 = vector.load %arg8[%c5, %c0_29] : memref<6x32xf32, #tpu.memory_space<vmem>>, vector<1x32xf32>
    %56 = arith.truncf %53 : vector<16x32xf32> to vector<16x32xbf16>
    %cst_30 = arith.constant dense<0.000000e+00> : vector<16x32xf32>
    %57 = tpu.matmul %56, %54, %cst_30 {dimension_numbers = #tpu.dot_dimension_numbers<[1], [0], [0], [1], [0, 0, 1, 1], [], []>} : vector<16x32xbf16>, vector<32x32xbf16>, vector<16x32xf32> -> vector<16x32xf32>
    %58 = vector.broadcast %55 : vector<1x32xf32> to vector<16x32xf32>
    %59 = arith.addf %57, %58 : vector<16x32xf32>
    %cst_31 = arith.constant 0.00999999977 : f32
    %60 = vector.broadcast %cst_31 : f32 to vector<16x32xf32>
    %61 = arith.mulf %60, %59 : vector<16x32xf32>
    %62 = arith.maximumf %59, %61 : vector<16x32xf32>
    %63 = arith.truncf %62 : vector<16x32xf32> to vector<16x32xbf16>
    %c0_32 = arith.constant 0 : index
    %c0_33 = arith.constant 0 : index
    %64 = vector.load %arg9[%c0_32, %c0_33] : memref<32x512xbf16, #tpu.memory_space<vmem>>, vector<32x512xbf16>
    %cst_34 = arith.constant dense<0.000000e+00> : vector<16x512xf32>
    %65 = tpu.matmul %63, %64, %cst_34 {dimension_numbers = #tpu.dot_dimension_numbers<[1], [0], [0], [1], [0, 0, 1, 1], [], []>} : vector<16x32xbf16>, vector<32x512xbf16>, vector<16x512xf32> -> vector<16x512xf32>
    %c0_35 = arith.constant 0 : index
    %c0_36 = arith.constant 0 : index
    %66 = vector.load %arg10[%c0_35, %c0_36] : memref<1x512xf32, #tpu.memory_space<vmem>>, vector<1x512xf32>
    %67 = vector.broadcast %66 : vector<1x512xf32> to vector<16x512xf32>
    %68 = arith.addf %65, %67 : vector<16x512xf32>
    %cst_37 = arith.constant 0.000000e+00 : f32
    %69 = vector.broadcast %cst_37 : f32 to vector<16x512xf32>
    %70 = arith.subf %69, %68 : vector<16x512xf32>
    %71 = math.exp %70 : vector<16x512xf32>
    %cst_38 = arith.constant 1.000000e+00 : f32
    %72 = vector.broadcast %cst_38 : f32 to vector<16x512xf32>
    %73 = arith.addf %72, %71 : vector<16x512xf32>
    %74 = tpu.reciprocal %73 {approx = true} : vector<16x512xf32> -> vector<16x512xf32>
    %75 = vector.extract_strided_slice %74 {offsets = [0, 0], sizes = [16, 16], strides = [1, 1]} : vector<16x512xf32> to vector<16x16xf32>
    %76 = vector.extract_strided_slice %74 {offsets = [0, 128], sizes = [16, 128], strides = [1, 1]} : vector<16x512xf32> to vector<16x128xf32>
    %77 = vector.extract_strided_slice %74 {offsets = [0, 256], sizes = [16, 128], strides = [1, 1]} : vector<16x512xf32> to vector<16x128xf32>
    %78 = vector.extract_strided_slice %74 {offsets = [0, 384], sizes = [16, 128], strides = [1, 1]} : vector<16x512xf32> to vector<16x128xf32>
    %79 = arith.addf %76, %77 : vector<16x128xf32>
    %cst_39 = arith.constant 5.000000e-01 : f32
    %80 = vector.broadcast %cst_39 : f32 to vector<16x128xf32>
    %81 = arith.mulf %79, %80 : vector<16x128xf32>
    %82 = arith.mulf %78, %81 : vector<16x128xf32>
    %cst_40 = arith.constant 9.99999997E-7 : f32
    %cst_41 = arith.constant 0.999998986 : f32
    %83 = vector.broadcast %cst_40 : f32 to vector<16x128xf32>
    %84 = arith.maximumf %83, %82 : vector<16x128xf32>
    %85 = vector.broadcast %cst_41 : f32 to vector<16x128xf32>
    %86 = arith.minimumf %85, %84 : vector<16x128xf32>
    %87 = math.log %86 : vector<16x128xf32>
    %c0_42 = arith.constant 0 : index
    %c0_43 = arith.constant 0 : index
    %88 = vector.load %arg3[%c0_42, %c0_43] : memref<16x128xbf16, #tpu.memory_space<vmem>>, vector<16x128xbf16>
    %89 = arith.extf %88 : vector<16x128xbf16> to vector<16x128xf32>
    %90 = arith.mulf %87, %89 : vector<16x128xf32>
    %cst_44 = arith.constant 1.000000e+00 : f32
    %91 = vector.broadcast %cst_44 : f32 to vector<16x128xf32>
    %92 = arith.subf %91, %86 : vector<16x128xf32>
    %93 = math.log %92 : vector<16x128xf32>
    %c0_45 = arith.constant 0 : index
    %c0_46 = arith.constant 0 : index
    %94 = vector.load %arg4[%c0_45, %c0_46] : memref<16x128xbf16, #tpu.memory_space<vmem>>, vector<16x128xbf16>
    %95 = arith.extf %94 : vector<16x128xbf16> to vector<16x128xf32>
    %96 = arith.mulf %93, %95 : vector<16x128xf32>
    %97 = arith.addf %90, %96 : vector<16x128xf32>
    %cst_47 = arith.constant dense<0.000000e+00> : vector<16xf32>
    %98 = vector.multi_reduction <add>, %97, %cst_47 [1] : vector<16x128xf32> to vector<16xf32>
    %99 = vector.shape_cast %98 : vector<16xf32> to vector<16x1xf32>
    %cst_48 = arith.constant dense<0.000000e+00> : vector<1xf32>
    %100 = vector.multi_reduction <add>, %99, %cst_48 [0] : vector<16x1xf32> to vector<1xf32>
    %101 = vector.shape_cast %100 : vector<1xf32> to vector<1x1xf32>
    %102 = vector.extract_strided_slice %75 {offsets = [0, 0], sizes = [16, 1], strides = [1, 1]} : vector<16x16xf32> to vector<16x1xf32>
    %103 = vector.broadcast %102 : vector<16x1xf32> to vector<16x16xf32>
    %104 = arith.divf %75, %103 : vector<16x16xf32>
    %c0_49 = arith.constant 0 : index
    %c0_50 = arith.constant 0 : index
    %105 = vector.load %arg12[%c0_49, %c0_50] : memref<16x16xf32, #tpu.memory_space<vmem>>, vector<16x16xf32>
    tpu.vector_store %arg12[%c0_49, %c0_50], %104 {strides = array<i32>} : memref<16x16xf32, #tpu.memory_space<vmem>>, vector<16x16xf32>,
    %c16_i32 = arith.constant 16 : i32
    %106 = arith.muli %arg0, %c16_i32 : i32
    %107 = tpu.iota {dimensions = array<i32: 0>} : vector<16x16xi32>
    %108 = vector.broadcast %106 : i32 to vector<16x16xi32>
    %109 = arith.addi %108, %107 : vector<16x16xi32>
    %110 = tpu.iota {dimensions = array<i32: 1>} : vector<16x16xi32>
    %c4_i32 = arith.constant 4 : i32
    %111 = vector.broadcast %c4_i32 : i32 to vector<16x16xi32>
    %112 = arith.cmpi slt, %109, %111 : vector<16x16xi32>
    %c10_i32 = arith.constant 10 : i32
    %113 = vector.broadcast %c10_i32 : i32 to vector<16x16xi32>
    %114 = arith.cmpi slt, %110, %113 : vector<16x16xi32>
    %115 = arith.andi %112, %114 : vector<16x16xi1>
    %c0_51 = arith.constant 0 : index
    %c0_52 = arith.constant 0 : index
    %116 = vector.load %arg2[%c0_51, %c0_52] : memref<16x16xf32, #tpu.memory_space<vmem>>, vector<16x16xf32>
    %117 = arith.subf %116, %104 : vector<16x16xf32>
    %c0_53 = arith.constant 0 : index
    %c0_54 = arith.constant 0 : index
    %118 = vector.load %arg2[%c0_53, %c0_54] : memref<16x16xf32, #tpu.memory_space<vmem>>, vector<16x16xf32>
    %119 = tpu.reciprocal %118 {approx = true} : vector<16x16xf32> -> vector<16x16xf32>
    %120 = arith.mulf %117, %119 : vector<16x16xf32>
    %121 = math.absf %120 : vector<16x16xf32>
    %cst_55 = arith.constant 0.000000e+00 : f32
    %122 = vector.broadcast %cst_55 : f32 to vector<16x16xf32>
    %123 = arith.select %115, %121, %122 : vector<16x16xi1>, vector<16x16xf32>
    %cst_56 = arith.constant dense<0.000000e+00> : vector<16xf32>
    %124 = vector.multi_reduction <add>, %123, %cst_56 [1] : vector<16x16xf32> to vector<16xf32>
    %125 = vector.shape_cast %124 : vector<16xf32> to vector<16x1xf32>
    %cst_57 = arith.constant dense<0.000000e+00> : vector<1xf32>
    %126 = vector.multi_reduction <add>, %125, %cst_57 [0] : vector<16x1xf32> to vector<1xf32>
    %127 = vector.shape_cast %126 : vector<1xf32> to vector<1x1xf32>
    %128 = tpu.iota {dimensions = array<i32: 0>} : vector<8x128xi32>
    %129 = tpu.iota {dimensions = array<i32: 1>} : vector<8x128xi32>
    %c0_i32 = arith.constant 0 : i32
    %130 = vector.broadcast %c0_i32 : i32 to vector<8x128xi32>
    %131 = arith.cmpi eq, %128, %130 : vector<8x128xi32>
    %c0_i32_58 = arith.constant 0 : i32
    %132 = vector.broadcast %c0_i32_58 : i32 to vector<8x128xi32>
    %133 = arith.cmpi eq, %129, %132 : vector<8x128xi32>
    %134 = arith.andi %131, %133 : vector<8x128xi1>
    %cst_59 = arith.constant 0.000000e+00 : f32
    %135 = vector.broadcast %cst_59 : f32 to vector<1x1xf32>
    %136 = arith.subf %135, %101 : vector<1x1xf32>
    %cst_60 = arith.constant 0.000000e+00 : f32
    %137 = vector.shape_cast %136 : vector<1x1xf32> to vector<1x1xf32>
    %138 = vector.broadcast %137 : vector<1x1xf32> to vector<8x128xf32>
    %139 = vector.broadcast %cst_60 : f32 to vector<8x128xf32>
    %140 = arith.select %134, %138, %139 : vector<8x128xi1>, vector<8x128xf32>
    %c0_i32_61 = arith.constant 0 : i32
    %141 = vector.broadcast %c0_i32_61 : i32 to vector<8x128xi32>
    %142 = arith.cmpi eq, %128, %141 : vector<8x128xi32>
    %c1_i32 = arith.constant 1 : i32
    %143 = vector.broadcast %c1_i32 : i32 to vector<8x128xi32>
    %144 = arith.cmpi eq, %129, %143 : vector<8x128xi32>
    %145 = arith.andi %142, %144 : vector<8x128xi1>
    %cst_62 = arith.constant 0.000000e+00 : f32
    %146 = vector.shape_cast %127 : vector<1x1xf32> to vector<1x1xf32>
    %147 = vector.broadcast %146 : vector<1x1xf32> to vector<8x128xf32>
    %148 = vector.broadcast %cst_62 : f32 to vector<8x128xf32>
    %149 = arith.select %145, %147, %148 : vector<8x128xi1>, vector<8x128xf32>
    %150 = arith.addf %140, %149 : vector<8x128xf32>
    %c0_63 = arith.constant 0 : index
    %c0_64 = arith.constant 0 : index
    %151 = vector.load %arg11[%c0_63, %c0_64] : memref<8x128xf32, #tpu.memory_space<vmem>>, vector<8x128xf32>
    tpu.vector_store %arg11[%c0_63, %c0_64], %150 {strides = array<i32>} : memref<8x128xf32, #tpu.memory_space<vmem>>, vector<8x128xf32>,
    return
  }
  func.func @transform_0(%arg0: i32) -> (i32, i32) {
    %c0_i32 = arith.constant 0 : i32
    %c0_i32_0 = arith.constant 0 : i32
    return %arg0, %c0_i32 : i32, i32
  }
  func.func @transform_1(%arg0: i32) -> (i32, i32) {
    %c0_i32 = arith.constant 0 : i32
    %c0_i32_0 = arith.constant 0 : i32
    return %arg0, %c0_i32 : i32, i32
  }
  func.func @transform_2(%arg0: i32) -> (i32, i32) {
    %c0_i32 = arith.constant 0 : i32
    %c0_i32_0 = arith.constant 0 : i32
    return %arg0, %c0_i32 : i32, i32
  }
  func.func @transform_3(%arg0: i32) -> (i32, i32) {
    %c0_i32 = arith.constant 0 : i32
    %c0_i32_0 = arith.constant 0 : i32
    return %arg0, %c0_i32 : i32, i32
  }
  func.func @transform_4(%arg0: i32) -> (i32, i32) {
    %c0_i32 = arith.constant 0 : i32
    %c0_i32_0 = arith.constant 0 : i32
    %c0_i32_1 = arith.constant 0 : i32
    return %c0_i32, %c0_i32_0 : i32, i32
  }
  func.func @transform_5(%arg0: i32) -> (i32, i32) {
    %c0_i32 = arith.constant 0 : i32
    %c0_i32_0 = arith.constant 0 : i32
    %c0_i32_1 = arith.constant 0 : i32
    return %c0_i32, %c0_i32_0 : i32, i32
  }
  func.func @transform_6(%arg0: i32) -> (i32, i32) {
    %c0_i32 = arith.constant 0 : i32
    %c0_i32_0 = arith.constant 0 : i32
    %c0_i32_1 = arith.constant 0 : i32
    return %c0_i32, %c0_i32_0 : i32, i32
  }
  func.func @transform_7(%arg0: i32) -> (i32, i32) {
    %c0_i32 = arith.constant 0 : i32
    %c0_i32_0 = arith.constant 0 : i32
    %c0_i32_1 = arith.constant 0 : i32
    return %c0_i32, %c0_i32_0 : i32, i32
  }
  func.func @transform_8(%arg0: i32) -> (i32, i32) {
    %c0_i32 = arith.constant 0 : i32
    %c0_i32_0 = arith.constant 0 : i32
    %c0_i32_1 = arith.constant 0 : i32
    return %c0_i32, %c0_i32_0 : i32, i32
  }
  func.func @transform_9(%arg0: i32) -> (i32, i32) {
    %c0_i32 = arith.constant 0 : i32
    %c0_i32_0 = arith.constant 0 : i32
    %c0_i32_1 = arith.constant 0 : i32
    return %c0_i32, %c0_i32_0 : i32, i32
  }
  func.func @transform_10(%arg0: i32) -> (i32, i32) {
    %c0_i32 = arith.constant 0 : i32
    %c0_i32_0 = arith.constant 0 : i32
    return %arg0, %c0_i32 : i32, i32
  }
  func.func @transform_11(%arg0: i32) -> (i32, i32) {
    %c0_i32 = arith.constant 0 : i32
    %c0_i32_0 = arith.constant 0 : i32
    return %arg0, %c0_i32 : i32, i32
  }
}

</mosaic_0001>

<llo_original>
// kernel: tpu_custom_call.1
$region0: #{tpu_custom_call.1}
  #allocation0 [shape = 'u32[]', space=smem, size = 0x4, offset = 0x4, fixed_abs, tag = 'smem constant byte address 0x4 - core index']
  #allocation1 [shape = 'u32[144,128]{1,0:T(1,128)}', space=vmem, size = 0x12000, scoped, tag = 'internal scratch']
  %s0 = inlined_call_operand.vmem [shape: bf16[16,16], index: 0, kind: input, shape index: {}]
  %s1 = inlined_call_operand.vmem [shape: f32[16,16], index: 1, kind: input, shape index: {}]
  %s2 = inlined_call_operand.vmem [shape: bf16[16,128], index: 2, kind: input, shape index: {}]
  %s3 = inlined_call_operand.vmem [shape: bf16[16,128], index: 3, kind: input, shape index: {}]
  %s4 = inlined_call_operand.vmem [shape: bf16[16,32], index: 4, kind: input, shape index: {}]
  %s5 = inlined_call_operand.vmem [shape: f32[1,32], index: 5, kind: input, shape index: {}]
  %s6 = inlined_call_operand.vmem [shape: bf16[192,32], index: 6, kind: input, shape index: {}]
  %s7 = inlined_call_operand.vmem [shape: f32[6,32], index: 7, kind: input, shape index: {}]
  %s8 = inlined_call_operand.vmem [shape: bf16[32,512], index: 8, kind: input, shape index: {}]
  %s9 = inlined_call_operand.vmem [shape: f32[1,512], index: 9, kind: input, shape index: {}]
  %s10 = inlined_call_operand.hbm [shape: f32[8,128], index: 10, kind: output, shape index: {0}]
  %s11 = inlined_call_operand.hbm [shape: f32[16,16], index: 11, kind: output, shape index: {1}]
  %12 = xla_tuple %s10, %s11
  %s13 = sld [smem:[#allocation0]]
  $region58: #{tpu_custom_call.1} parent=0
    _
  %s15 = ssub.s32 1, %s13
  %s16 = scalar_select 0, %s15, %s13
  $region1: #{tpu_custom_call.1} parent=0
    #allocation2 [shape = 'u8[4096]{0}', space=vmem, size = 0x1000, scoped, tag = 'output window, operand 0, single buffered']
    #allocation3 [shape = 's32[1]{0}', space=sflag, size = 0x4, scoped, tag = 'scoped memory for tpu_custom_call.1']
    #allocation4 [shape = 'u8[8192]{0}', space=vmem, size = 0x2000, scoped, tag = 'output window, operand 1, single buffered']
    #allocation5 [shape = 's32[1]{0}', space=sflag, size = 0x4, scoped, tag = 'scoped memory for tpu_custom_call.1']
    %17 = vsyncpa [#allocation3], 0
    %18 = vsyncpa [#allocation5], 0
    // Predicated region
    $region2: #{tpu_custom_call.1} parent=1 // pred_check
      _
    $region3: #{tpu_custom_call.1} parent=1 // pred_check_branch
      %20 = sbr.rel (0) target = $region5
    $region4: #{tpu_custom_call.1} parent=1 // pred_region
      _
    $region5: #{tpu_custom_call.1} parent=1 // pred_fallthru
      _
    // Predicated region
    $region6: #{tpu_custom_call.1} parent=1 // pred_check
      _
    $region7: #{tpu_custom_call.1} parent=1 // pred_check_branch
      %22 = sbr.rel (0) target = $region9
    $region8: #{tpu_custom_call.1} parent=1 // pred_region
      _
    $region9: #{tpu_custom_call.1} parent=1 // pred_fallthru
      _
    // Predicated region
    $region10: #{tpu_custom_call.1} parent=1 // pred_check
      _
    $region11: #{tpu_custom_call.1} parent=1 // pred_check_branch
      %24 = sbr.rel (0) target = $region13
    $region12: #{tpu_custom_call.1} parent=1 // pred_region
      _
    $region13: #{tpu_custom_call.1} parent=1 // pred_fallthru
      _
    // Predicated region
    $region14: #{tpu_custom_call.1} parent=1 // pred_check
      _
    $region15: #{tpu_custom_call.1} parent=1 // pred_check_branch
      %26 = sbr.rel (0) target = $region17
    $region16: #{tpu_custom_call.1} parent=1 // pred_region
      _
    $region17: #{tpu_custom_call.1} parent=1 // pred_fallthru
      _
    // Predicated region
    $region18: #{tpu_custom_call.1} parent=1 // pred_check
      _
    $region19: #{tpu_custom_call.1} parent=1 // pred_check_branch
      %28 = sbr.rel (0) target = $region21
    $region20: #{tpu_custom_call.1} parent=1 // pred_region
      _
    $region21: #{tpu_custom_call.1} parent=1 // pred_fallthru
      _
    // Predicated region
    $region22: #{tpu_custom_call.1} parent=1 // pred_check
      _
    $region23: #{tpu_custom_call.1} parent=1 // pred_check_branch
      %30 = sbr.rel (0) target = $region25
    $region24: #{tpu_custom_call.1} parent=1 // pred_region
      _
    $region25: #{tpu_custom_call.1} parent=1 // pred_fallthru
      _
    // Predicated region
    $region26: #{tpu_custom_call.1} parent=1 // pred_check
      _
    $region27: #{tpu_custom_call.1} parent=1 // pred_check_branch
      %32 = sbr.rel (0) target = $region29
    $region28: #{tpu_custom_call.1} parent=1 // pred_region
      _
    $region29: #{tpu_custom_call.1} parent=1 // pred_fallthru
      _
    // Predicated region
    $region30: #{tpu_custom_call.1} parent=1 // pred_check
      _
    $region31: #{tpu_custom_call.1} parent=1 // pred_check_branch
      %34 = sbr.rel (0) target = $region33
    $region32: #{tpu_custom_call.1} parent=1 // pred_region
      _
    $region33: #{tpu_custom_call.1} parent=1 // pred_fallthru
      _
    // Predicated region
    $region34: #{tpu_custom_call.1} parent=1 // pred_check
      _
    $region35: #{tpu_custom_call.1} parent=1 // pred_check_branch
      %36 = sbr.rel (0) target = $region37
    $region36: #{tpu_custom_call.1} parent=1 // pred_region
      _
    $region37: #{tpu_custom_call.1} parent=1 // pred_fallthru
      _
    // Predicated region
    $region38: #{tpu_custom_call.1} parent=1 // pred_check
      _
    $region39: #{tpu_custom_call.1} parent=1 // pred_check_branch
      %38 = sbr.rel (0) target = $region41
    $region40: #{tpu_custom_call.1} parent=1 // pred_region
      _
    $region41: #{tpu_custom_call.1} parent=1 // pred_fallthru
      _
    %v40 = vld [vmem:[%s0] sm:$0xf]
    %v41 = vld [vmem:[%s0 + $0x4] sm:$0xf]
    %v42 = vld [vmem:[%s4] sm:$0xf]
    %v43 = vld [vmem:[%s4 + $0x4] sm:$0xf]
    %v44 = vld [vmem:[%s5] sm:$0x1]
    %v46 = vlaneseq
    %v47 = vshrl.u32 %v46, 7
    %v48 = vsub.s32 0, %v47
    %v49 = vrot.slane %v44, %v48
    %v53 = vunpack.c.l.b16 %v40
    %v54 = vunpack.c.l.b16 %v41
    %v55 = vpack.c.b16 %v54, %v53
    %v58 = vunpack.c.l.b16 %v42
    %v59 = vunpack.c.l.b16 %v43
    %v60 = vpack.c.b16 %v59, %v58
    %vm62 = vcmask 130048
    %v64 = vsel %vm62, %v55, 0
    %66 = vmatprep.subr.bf16.mxu0 0
    %67 = vmatpush1.bf16.msra.mxu0 %v60
    %68 = vmatprep.subr.bf16.mxu0 0
    %69 = vmatpush1.bf16.msra.mxu0 0
    %70 = vmatprep.subr.bf16.mxu0 0
    %71 = vmatpush1.bf16.msra.mxu0 0
    %72 = vmatprep.subr.bf16.mxu0 0
    %73 = vmatpush1.bf16.msra.mxu0 0
    %74 = vmatprep.subr.bf16.mxu0 0
    %75 = vmatpush1.bf16.msra.mxu0 0
    %76 = vmatprep.subr.bf16.mxu0 0
    %77 = vmatpush1.bf16.msra.mxu0 0
    %78 = vmatprep.subr.bf16.mxu0 0
    %79 = vmatpush1.bf16.msra.mxu0 0
    %80 = vmatprep.subr.bf16.mxu0 0
    %81 = vmatpush1.bf16.msra.mxu0 0
    %82 = vmatprep.subr.bf16.mxu0 0
    %83 = vmatpush1.bf16.msra.mxu0 0
    %84 = vmatprep.subr.bf16.mxu0 0
    %85 = vmatpush1.bf16.msra.mxu0 0
    %86 = vmatprep.subr.bf16.mxu0 0
    %87 = vmatpush1.bf16.msra.mxu0 0
    %88 = vmatprep.subr.bf16.mxu0 0
    %89 = vmatpush1.bf16.msra.mxu0 0
    %90 = vmatprep.subr.bf16.mxu0 0
    %91 = vmatpush1.bf16.msra.mxu0 0
    %92 = vmatprep.subr.bf16.mxu0 0
    %93 = vmatpush1.bf16.msra.mxu0 0
    %94 = vmatprep.subr.bf16.mxu0 0
    %95 = vmatpush1.bf16.msra.mxu0 0
    %96 = vmatprep.subr.bf16.mxu0 0
    %97 = vmatpush1.bf16.msra.mxu0 0
    %98 = vmatprep.mubr.bf16.mxu0 0
    %99 = vmatmul.mubr.bf16.gmra.mrb[0].mxu0 %v64
    %v100 = vpop.f32.mrb[0].mxu0
    %v101 = vadd.f32 %v49, %v100
    %v102 = vpop.f32.mrb[0].mxu0
    %v103 = vpop.f32.mrb[0].mxu0
    %v104 = vadd.f32 %v49, %v103
    %v105 = vpop.f32.mrb[0].mxu0
    %106 = vdwg.mxu0
    %v107 = vmul.f32 %v101, 0.01
    %v108 = vmul.f32 %v104, 0.01
    %v109 = vmax.f32 %v101, %v107
    %v110 = vmax.f32 %v104, %v108
    %v111 = vld [vmem:[%s6] sm:$0xf]
    %v112 = vld [vmem:[%s6 + $0x4] sm:$0xf]
    %v113 = vld [vmem:[%s6 + $0x8] sm:$0xf]
    %v114 = vld [vmem:[%s6 + $0xc] sm:$0xf]
    %v115 = vld [vmem:[%s7] sm:$0x1]
    %v116 = vpack.c.bf16 %v110, %v109
    %v117 = vlaneseq
    %v118 = vshrl.u32 %v117, 7
    %v119 = vsub.s32 0, %v118
    %v120 = vrot.slane %v115, %v119
    %v125 = vunpack.c.l.b16 %v111
    %v126 = vunpack.c.l.b16 %v112
    %v127 = vunpack.c.l.b16 %v113
    %v128 = vunpack.c.l.b16 %v114
    %v129 = vpack.c.b16 %v126, %v125
    %v130 = vpack.c.b16 %v128, %v127
    %vm133 = vcmask 261120
    %v135 = vsel %vm133, %v116, 0
    %137 = vmatprep.subr.bf16.mxu0 0
    %138 = vmatpush1.bf16.msra.mxu0 %v129
    %139 = vmatprep.subr.bf16.mxu0 0
    %140 = vmatpush1.bf16.msra.mxu0 %v130
    %141 = vmatprep.subr.bf16.mxu0 0
    %142 = vmatpush1.bf16.msra.mxu0 0
    %143 = vmatprep.subr.bf16.mxu0 0
    %144 = vmatpush1.bf16.msra.mxu0 0
    %145 = vmatprep.subr.bf16.mxu0 0
    %146 = vmatpush1.bf16.msra.mxu0 0
    %147 = vmatprep.subr.bf16.mxu0 0
    %148 = vmatpush1.bf16.msra.mxu0 0
    %149 = vmatprep.subr.bf16.mxu0 0
    %150 = vmatpush1.bf16.msra.mxu0 0
    %151 = vmatprep.subr.bf16.mxu0 0
    %152 = vmatpush1.bf16.msra.mxu0 0
    %153 = vmatprep.subr.bf16.mxu0 0
    %154 = vmatpush1.bf16.msra.mxu0 0
    %155 = vmatprep.subr.bf16.mxu0 0
    %156 = vmatpush1.bf16.msra.mxu0 0
    %157 = vmatprep.subr.bf16.mxu0 0
    %158 = vmatpush1.bf16.msra.mxu0 0
    %159 = vmatprep.subr.bf16.mxu0 0
    %160 = vmatpush1.bf16.msra.mxu0 0
    %161 = vmatprep.subr.bf16.mxu0 0
    %162 = vmatpush1.bf16.msra.mxu0 0
    %163 = vmatprep.subr.bf16.mxu0 0
    %164 = vmatpush1.bf16.msra.mxu0 0
    %165 = vmatprep.subr.bf16.mxu0 0
    %166 = vmatpush1.bf16.msra.mxu0 0
    %167 = vmatprep.subr.bf16.mxu0 0
    %168 = vmatpush1.bf16.msra.mxu0 0
    %169 = vmatprep.mubr.bf16.mxu0 0
    %170 = vmatmul.mubr.bf16.gmra.mrb[0].mxu0 %v135
    %v171 = vpop.f32.mrb[0].mxu0
    %v172 = vadd.f32 %v120, %v171
    %v173 = vpop.f32.mrb[0].mxu0
    %v174 = vpop.f32.mrb[0].mxu0
    %v175 = vadd.f32 %v120, %v174
    %v176 = vpop.f32.mrb[0].mxu0
    %177 = vdwg.mxu0
    %v178 = vmul.f32 %v172, 0.01
    %v179 = vmul.f32 %v175, 0.01
    %v180 = vmax.f32 %v172, %v178
    %v181 = vmax.f32 %v175, %v179
    %v182 = vld [vmem:[%s6 + $0x10] sm:$0xf]
    %v183 = vld [vmem:[%s6 + $0x14] sm:$0xf]
    %v184 = vld [vmem:[%s6 + $0x18] sm:$0xf]
    %v185 = vld [vmem:[%s6 + $0x1c] sm:$0xf]
    %v186 = vld [vmem:[%s7 + $0x1] sm:$0x1]
    %v187 = vpack.c.bf16 %v181, %v180
    %v188 = vlaneseq
    %v189 = vshrl.u32 %v188, 7
    %v190 = vsub.s32 0, %v189
    %v191 = vrot.slane %v186, %v190
    %v196 = vunpack.c.l.b16 %v182
    %v197 = vunpack.c.l.b16 %v183
    %v198 = vunpack.c.l.b16 %v184
    %v199 = vunpack.c.l.b16 %v185
    %v200 = vpack.c.b16 %v197, %v196
    %v201 = vpack.c.b16 %v199, %v198
    %v205 = vsel %vm133, %v187, 0
    %207 = vmatprep.subr.bf16.mxu0 0
    %208 = vmatpush1.bf16.msra.mxu0 %v200
    %209 = vmatprep.subr.bf16.mxu0 0
    %210 = vmatpush1.bf16.msra.mxu0 %v201
    %211 = vmatprep.subr.bf16.mxu0 0
    %212 = vmatpush1.bf16.msra.mxu0 0
    %213 = vmatprep.subr.bf16.mxu0 0
    %214 = vmatpush1.bf16.msra.mxu0 0
    %215 = vmatprep.subr.bf16.mxu0 0
    %216 = vmatpush1.bf16.msra.mxu0 0
    %217 = vmatprep.subr.bf16.mxu0 0
    %218 = vmatpush1.bf16.msra.mxu0 0
    %219 = vmatprep.subr.bf16.mxu0 0
    %220 = vmatpush1.bf16.msra.mxu0 0
    %221 = vmatprep.subr.bf16.mxu0 0
    %222 = vmatpush1.bf16.msra.mxu0 0
    %223 = vmatprep.subr.bf16.mxu0 0
    %224 = vmatpush1.bf16.msra.mxu0 0
    %225 = vmatprep.subr.bf16.mxu0 0
    %226 = vmatpush1.bf16.msra.mxu0 0
    %227 = vmatprep.subr.bf16.mxu0 0
    %228 = vmatpush1.bf16.msra.mxu0 0
    %229 = vmatprep.subr.bf16.mxu0 0
    %230 = vmatpush1.bf16.msra.mxu0 0
    %231 = vmatprep.subr.bf16.mxu0 0
    %232 = vmatpush1.bf16.msra.mxu0 0
    %233 = vmatprep.subr.bf16.mxu0 0
    %234 = vmatpush1.bf16.msra.mxu0 0
    %235 = vmatprep.subr.bf16.mxu0 0
    %236 = vmatpush1.bf16.msra.mxu0 0
    %237 = vmatprep.subr.bf16.mxu0 0
    %238 = vmatpush1.bf16.msra.mxu0 0
    %239 = vmatprep.mubr.bf16.mxu0 0
    %240 = vmatmul.mubr.bf16.gmra.mrb[0].mxu0 %v205
    %v241 = vpop.f32.mrb[0].mxu0
    %v242 = vadd.f32 %v191, %v241
    %v243 = vpop.f32.mrb[0].mxu0
    %v244 = vpop.f32.mrb[0].mxu0
    %v245 = vadd.f32 %v191, %v244
    %v246 = vpop.f32.mrb[0].mxu0
    %247 = vdwg.mxu0
    %v248 = vmul.f32 %v242, 0.01
    %v249 = vmul.f32 %v245, 0.01
    %v250 = vmax.f32 %v242, %v248
    %v251 = vmax.f32 %v245, %v249
    %v252 = vld [vmem:[%s6 + $0x20] sm:$0xf]
    %v253 = vld [vmem:[%s6 + $0x24] sm:$0xf]
    %v254 = vld [vmem:[%s6 + $0x28] sm:$0xf]
    %v255 = vld [vmem:[%s6 + $0x2c] sm:$0xf]
    %v256 = vld [vmem:[%s7 + $0x2] sm:$0x1]
    %v257 = vpack.c.bf16 %v251, %v250
    %v258 = vlaneseq
    %v259 = vshrl.u32 %v258, 7
    %v260 = vsub.s32 0, %v259
    %v261 = vrot.slane %v256, %v260
    %v266 = vunpack.c.l.b16 %v252
    %v267 = vunpack.c.l.b16 %v253
    %v268 = vunpack.c.l.b16 %v254
    %v269 = vunpack.c.l.b16 %v255
    %v270 = vpack.c.b16 %v267, %v266
    %v271 = vpack.c.b16 %v269, %v268
    %v275 = vsel %vm133, %v257, 0
    %277 = vmatprep.subr.bf16.mxu0 0
    %278 = vmatpush1.bf16.msra.mxu0 %v270
    %279 = vmatprep.subr.bf16.mxu0 0
    %280 = vmatpush1.bf16.msra.mxu0 %v271
    %281 = vmatprep.subr.bf16.mxu0 0
    %282 = vmatpush1.bf16.msra.mxu0 0
    %283 = vmatprep.subr.bf16.mxu0 0
    %284 = vmatpush1.bf16.msra.mxu0 0
    %285 = vmatprep.subr.bf16.mxu0 0
    %286 = vmatpush1.bf16.msra.mxu0 0
    %287 = vmatprep.subr.bf16.mxu0 0
    %288 = vmatpush1.bf16.msra.mxu0 0
    %289 = vmatprep.subr.bf16.mxu0 0
    %290 = vmatpush1.bf16.msra.mxu0 0
    %291 = vmatprep.subr.bf16.mxu0 0
    %292 = vmatpush1.bf16.msra.mxu0 0
    %293 = vmatprep.subr.bf16.mxu0 0
    %294 = vmatpush1.bf16.msra.mxu0 0
    %295 = vmatprep.subr.bf16.mxu0 0
    %296 = vmatpush1.bf16.msra.mxu0 0
    %297 = vmatprep.subr.bf16.mxu0 0
    %298 = vmatpush1.bf16.msra.mxu0 0
    %299 = vmatprep.subr.bf16.mxu0 0
    %300 = vmatpush1.bf16.msra.mxu0 0
    %301 = vmatprep.subr.bf16.mxu0 0
    %302 = vmatpush1.bf16.msra.mxu0 0
    %303 = vmatprep.subr.bf16.mxu0 0
    %304 = vmatpush1.bf16.msra.mxu0 0
    %305 = vmatprep.subr.bf16.mxu0 0
    %306 = vmatpush1.bf16.msra.mxu0 0
    %307 = vmatprep.subr.bf16.mxu0 0
    %308 = vmatpush1.bf16.msra.mxu0 0
    %309 = vmatprep.mubr.bf16.mxu0 0
    %310 = vmatmul.mubr.bf16.gmra.mrb[0].mxu0 %v275
    %v311 = vpop.f32.mrb[0].mxu0
    %v312 = vadd.f32 %v261, %v311
    %v313 = vpop.f32.mrb[0].mxu0
    %v314 = vpop.f32.mrb[0].mxu0
    %v315 = vadd.f32 %v261, %v314
    %v316 = vpop.f32.mrb[0].mxu0
    %317 = vdwg.mxu0
    %v318 = vmul.f32 %v312, 0.01
    %v319 = vmul.f32 %v315, 0.01
    %v320 = vmax.f32 %v312, %v318
    %v321 = vmax.f32 %v315, %v319
    %v322 = vld [vmem:[%s6 + $0x30] sm:$0xf]
    %v323 = vld [vmem:[%s6 + $0x34] sm:$0xf]
    %v324 = vld [vmem:[%s6 + $0x38] sm:$0xf]
    %v325 = vld [vmem:[%s6 + $0x3c] sm:$0xf]
    %v326 = vld [vmem:[%s7 + $0x3] sm:$0x1]
    %v327 = vpack.c.bf16 %v321, %v320
    %v328 = vlaneseq
    %v329 = vshrl.u32 %v328, 7
    %v330 = vsub.s32 0, %v329
    %v331 = vrot.slane %v326, %v330
    %v336 = vunpack.c.l.b16 %v322
    %v337 = vunpack.c.l.b16 %v323
    %v338 = vunpack.c.l.b16 %v324
    %v339 = vunpack.c.l.b16 %v325
    %v340 = vpack.c.b16 %v337, %v336
    %v341 = vpack.c.b16 %v339, %v338
    %v345 = vsel %vm133, %v327, 0
    %347 = vmatprep.subr.bf16.mxu0 0
    %348 = vmatpush1.bf16.msra.mxu0 %v340
    %349 = vmatprep.subr.bf16.mxu0 0
    %350 = vmatpush1.bf16.msra.mxu0 %v341
    %351 = vmatprep.subr.bf16.mxu0 0
    %352 = vmatpush1.bf16.msra.mxu0 0
    %353 = vmatprep.subr.bf16.mxu0 0
    %354 = vmatpush1.bf16.msra.mxu0 0
    %355 = vmatprep.subr.bf16.mxu0 0
    %356 = vmatpush1.bf16.msra.mxu0 0
    %357 = vmatprep.subr.bf16.mxu0 0
    %358 = vmatpush1.bf16.msra.mxu0 0
    %359 = vmatprep.subr.bf16.mxu0 0
    %360 = vmatpush1.bf16.msra.mxu0 0
    %361 = vmatprep.subr.bf16.mxu0 0
    %362 = vmatpush1.bf16.msra.mxu0 0
    %363 = vmatprep.subr.bf16.mxu0 0
    %364 = vmatpush1.bf16.msra.mxu0 0
    %365 = vmatprep.subr.bf16.mxu0 0
    %366 = vmatpush1.bf16.msra.mxu0 0
    %367 = vmatprep.subr.bf16.mxu0 0
    %368 = vmatpush1.bf16.msra.mxu0 0
    %369 = vmatprep.subr.bf16.mxu0 0
    %370 = vmatpush1.bf16.msra.mxu0 0
    %371 = vmatprep.subr.bf16.mxu0 0
    %372 = vmatpush1.bf16.msra.mxu0 0
    %373 = vmatprep.subr.bf16.mxu0 0
    %374 = vmatpush1.bf16.msra.mxu0 0
    %375 = vmatprep.subr.bf16.mxu0 0
    %376 = vmatpush1.bf16.msra.mxu0 0
    %377 = vmatprep.subr.bf16.mxu0 0
    %378 = vmatpush1.bf16.msra.mxu0 0
    %379 = vmatprep.mubr.bf16.mxu0 0
    %380 = vmatmul.mubr.bf16.gmra.mrb[0].mxu0 %v345
    %v381 = vpop.f32.mrb[0].mxu0
    %v382 = vadd.f32 %v331, %v381
    %v383 = vpop.f32.mrb[0].mxu0
    %v384 = vpop.f32.mrb[0].mxu0
    %v385 = vadd.f32 %v331, %v384
    %v386 = vpop.f32.mrb[0].mxu0
    %387 = vdwg.mxu0
    %v388 = vmul.f32 %v382, 0.01
    %v389 = vmul.f32 %v385, 0.01
    %v390 = vmax.f32 %v382, %v388
    %v391 = vmax.f32 %v385, %v389
    %v392 = vld [vmem:[%s6 + $0x40] sm:$0xf]
    %v393 = vld [vmem:[%s6 + $0x44] sm:$0xf]
    %v394 = vld [vmem:[%s6 + $0x48] sm:$0xf]
    %v395 = vld [vmem:[%s6 + $0x4c] sm:$0xf]
    %v396 = vld [vmem:[%s7 + $0x4] sm:$0x1]
    %v397 = vpack.c.bf16 %v391, %v390
    %v398 = vlaneseq
    %v399 = vshrl.u32 %v398, 7
    %v400 = vsub.s32 0, %v399
    %v401 = vrot.slane %v396, %v400
    %v406 = vunpack.c.l.b16 %v392
    %v407 = vunpack.c.l.b16 %v393
    %v408 = vunpack.c.l.b16 %v394
    %v409 = vunpack.c.l.b16 %v395
    %v410 = vpack.c.b16 %v407, %v406
    %v411 = vpack.c.b16 %v409, %v408
    %v415 = vsel %vm133, %v397, 0
    %417 = vmatprep.subr.bf16.mxu0 0
    %418 = vmatpush1.bf16.msra.mxu0 %v410
    %419 = vmatprep.subr.bf16.mxu0 0
    %420 = vmatpush1.bf16.msra.mxu0 %v411
    %421 = vmatprep.subr.bf16.mxu0 0
    %422 = vmatpush1.bf16.msra.mxu0 0
    %423 = vmatprep.subr.bf16.mxu0 0
    %424 = vmatpush1.bf16.msra.mxu0 0
    %425 = vmatprep.subr.bf16.mxu0 0
    %426 = vmatpush1.bf16.msra.mxu0 0
    %427 = vmatprep.subr.bf16.mxu0 0
    %428 = vmatpush1.bf16.msra.mxu0 0
    %429 = vmatprep.subr.bf16.mxu0 0
    %430 = vmatpush1.bf16.msra.mxu0 0
    %431 = vmatprep.subr.bf16.mxu0 0
    %432 = vmatpush1.bf16.msra.mxu0 0
    %433 = vmatprep.subr.bf16.mxu0 0
    %434 = vmatpush1.bf16.msra.mxu0 0
    %435 = vmatprep.subr.bf16.mxu0 0
    %436 = vmatpush1.bf16.msra.mxu0 0
    %437 = vmatprep.subr.bf16.mxu0 0
    %438 = vmatpush1.bf16.msra.mxu0 0
    %439 = vmatprep.subr.bf16.mxu0 0
    %440 = vmatpush1.bf16.msra.mxu0 0
    %441 = vmatprep.subr.bf16.mxu0 0
    %442 = vmatpush1.bf16.msra.mxu0 0
    %443 = vmatprep.subr.bf16.mxu0 0
    %444 = vmatpush1.bf16.msra.mxu0 0
    %445 = vmatprep.subr.bf16.mxu0 0
    %446 = vmatpush1.bf16.msra.mxu0 0
    %447 = vmatprep.subr.bf16.mxu0 0
    %448 = vmatpush1.bf16.msra.mxu0 0
    %449 = vmatprep.mubr.bf16.mxu0 0
    %450 = vmatmul.mubr.bf16.gmra.mrb[0].mxu0 %v415
    %v451 = vpop.f32.mrb[0].mxu0
    %v452 = vadd.f32 %v401, %v451
    %v453 = vpop.f32.mrb[0].mxu0
    %v454 = vpop.f32.mrb[0].mxu0
    %v455 = vadd.f32 %v401, %v454
    %v456 = vpop.f32.mrb[0].mxu0
    %457 = vdwg.mxu0
    %v458 = vmul.f32 %v452, 0.01
    %v459 = vmul.f32 %v455, 0.01
    %v460 = vmax.f32 %v452, %v458
    %v461 = vmax.f32 %v455, %v459
    %v462 = vld [vmem:[%s6 + $0x50] sm:$0xf]
    %v463 = vld [vmem:[%s6 + $0x54] sm:$0xf]
    %v464 = vld [vmem:[%s6 + $0x58] sm:$0xf]
    %v465 = vld [vmem:[%s6 + $0x5c] sm:$0xf]
    %v466 = vld [vmem:[%s7 + $0x5] sm:$0x1]
    %v467 = vpack.c.bf16 %v461, %v460
    %v468 = vlaneseq
    %v469 = vshrl.u32 %v468, 7
    %v470 = vsub.s32 0, %v469
    %v471 = vrot.slane %v466, %v470
    %v476 = vunpack.c.l.b16 %v462
    %v477 = vunpack.c.l.b16 %v463
    %v478 = vunpack.c.l.b16 %v464
    %v479 = vunpack.c.l.b16 %v465
    %v480 = vpack.c.b16 %v477, %v476
    %v481 = vpack.c.b16 %v479, %v478
    %v485 = vsel %vm133, %v467, 0
    %487 = vmatprep.subr.bf16.mxu0 0
    %488 = vmatpush1.bf16.msra.mxu0 %v480
    %489 = vmatprep.subr.bf16.mxu0 0
    %490 = vmatpush1.bf16.msra.mxu0 %v481
    %491 = vmatprep.subr.bf16.mxu0 0
    %492 = vmatpush1.bf16.msra.mxu0 0
    %493 = vmatprep.subr.bf16.mxu0 0
    %494 = vmatpush1.bf16.msra.mxu0 0
    %495 = vmatprep.subr.bf16.mxu0 0
    %496 = vmatpush1.bf16.msra.mxu0 0
    %497 = vmatprep.subr.bf16.mxu0 0
    %498 = vmatpush1.bf16.msra.mxu0 0
    %499 = vmatprep.subr.bf16.mxu0 0
    %500 = vmatpush1.bf16.msra.mxu0 0
    %501 = vmatprep.subr.bf16.mxu0 0
    %502 = vmatpush1.bf16.msra.mxu0 0
    %503 = vmatprep.subr.bf16.mxu0 0
    %504 = vmatpush1.bf16.msra.mxu0 0
    %505 = vmatprep.subr.bf16.mxu0 0
    %506 = vmatpush1.bf16.msra.mxu0 0
    %507 = vmatprep.subr.bf16.mxu0 0
    %508 = vmatpush1.bf16.msra.mxu0 0
    %509 = vmatprep.subr.bf16.mxu0 0
    %510 = vmatpush1.bf16.msra.mxu0 0
    %511 = vmatprep.subr.bf16.mxu0 0
    %512 = vmatpush1.bf16.msra.mxu0 0
    %513 = vmatprep.subr.bf16.mxu0 0
    %514 = vmatpush1.bf16.msra.mxu0 0
    %515 = vmatprep.subr.bf16.mxu0 0
    %516 = vmatpush1.bf16.msra.mxu0 0
    %517 = vmatprep.subr.bf16.mxu0 0
    %518 = vmatpush1.bf16.msra.mxu0 0
    %519 = vmatprep.mubr.bf16.mxu0 0
    %520 = vmatmul.mubr.bf16.gmra.mrb[0].mxu0 %v485
    %v521 = vpop.f32.mrb[0].mxu0
    %v522 = vadd.f32 %v471, %v521
    %v523 = vpop.f32.mrb[0].mxu0
    %v524 = vpop.f32.mrb[0].mxu0
    %v525 = vadd.f32 %v471, %v524
    %v526 = vpop.f32.mrb[0].mxu0
    %527 = vdwg.mxu0
    %v528 = vmul.f32 %v522, 0.01
    %v529 = vmul.f32 %v525, 0.01
    %v530 = vmax.f32 %v522, %v528
    %v531 = vmax.f32 %v525, %v529
    %v532 = vpack.c.bf16 %v531, %v530
    %v533 = vld [vmem:[%s8] sm:$0xff]
    %v534 = vld [vmem:[%s8 + $0x8] sm:$0xff]
    %v535 = vld [vmem:[%s8 + $0x10] sm:$0xff]
    %v536 = vld [vmem:[%s8 + $0x18] sm:$0xff]
    %v537 = vld [vmem:[%s8 + $0x20] sm:$0xff]
    %v538 = vld [vmem:[%s8 + $0x28] sm:$0xff]
    %v539 = vld [vmem:[%s8 + $0x30] sm:$0xff]
    %v540 = vld [vmem:[%s8 + $0x38] sm:$0xff]
    %v541 = vld [vmem:[%s9] sm:$0xf]
    %v543 = vlaneseq
    %v544 = vshrl.u32 %v543, 7
    %v545 = vsub.s32 0, %v544
    %v546 = vrot.slane %v541, %v545
    %v547 = vlaneseq
    %v548 = vshrl.u32 %v547, 7
    %v549 = vsub.s32 1, %v548
    %v550 = vrot.slane %v541, %v549
    %v551 = vlaneseq
    %v552 = vshrl.u32 %v551, 7
    %v553 = vsub.s32 2, %v552
    %v554 = vrot.slane %v541, %v553
    %v555 = vlaneseq
    %v556 = vshrl.u32 %v555, 7
    %v557 = vsub.s32 3, %v556
    %v558 = vrot.slane %v541, %v557
    %v571 = vunpack.c.l.b16 %v533
    %v572 = vunpack.c.h.b16 %v533
    %v573 = vunpack.c.l.b16 %v534
    %v574 = vunpack.c.h.b16 %v534
    %v575 = vunpack.c.l.b16 %v535
    %v576 = vunpack.c.h.b16 %v535
    %v577 = vunpack.c.l.b16 %v536
    %v578 = vunpack.c.h.b16 %v536
    %v579 = vunpack.c.l.b16 %v537
    %v580 = vunpack.c.h.b16 %v537
    %v581 = vunpack.c.l.b16 %v538
    %v582 = vunpack.c.h.b16 %v538
    %v583 = vunpack.c.l.b16 %v539
    %v584 = vunpack.c.h.b16 %v539
    %v585 = vunpack.c.l.b16 %v540
    %v586 = vunpack.c.h.b16 %v540
    %v587 = vpack.c.b16 %v575, %v571
    %v588 = vpack.c.b16 %v576, %v572
    %v589 = vpack.c.b16 %v577, %v573
    %v590 = vpack.c.b16 %v578, %v574
    %v591 = vpack.c.b16 %v583, %v579
    %v592 = vpack.c.b16 %v584, %v580
    %v593 = vpack.c.b16 %v585, %v581
    %v594 = vpack.c.b16 %v586, %v582
    %v604 = vsel %vm133, %v532, 0
    %606 = vmatprep.subr.bf16.mxu0 %v588
    %607 = vmatpush1.bf16.msra.mxu0 %v587
    %608 = vmatprep.subr.bf16.mxu0 %v592
    %609 = vmatpush1.bf16.msra.mxu0 %v591
    %610 = vmatprep.subr.bf16.mxu0 0
    %611 = vmatpush1.bf16.msra.mxu0 0
    %612 = vmatprep.subr.bf16.mxu0 0
    %613 = vmatpush1.bf16.msra.mxu0 0
    %614 = vmatprep.subr.bf16.mxu0 0
    %615 = vmatpush1.bf16.msra.mxu0 0
    %616 = vmatprep.subr.bf16.mxu0 0
    %617 = vmatpush1.bf16.msra.mxu0 0
    %618 = vmatprep.subr.bf16.mxu0 0
    %619 = vmatpush1.bf16.msra.mxu0 0
    %620 = vmatprep.subr.bf16.mxu0 0
    %621 = vmatpush1.bf16.msra.mxu0 0
    %622 = vmatprep.subr.bf16.mxu0 0
    %623 = vmatpush1.bf16.msra.mxu0 0
    %624 = vmatprep.subr.bf16.mxu0 0
    %625 = vmatpush1.bf16.msra.mxu0 0
    %626 = vmatprep.subr.bf16.mxu0 0
    %627 = vmatpush1.bf16.msra.mxu0 0
    %628 = vmatprep.subr.bf16.mxu0 0
    %629 = vmatpush1.bf16.msra.mxu0 0
    %630 = vmatprep.subr.bf16.mxu0 0
    %631 = vmatpush1.bf16.msra.mxu0 0
    %632 = vmatprep.subr.bf16.mxu0 0
    %633 = vmatpush1.bf16.msra.mxu0 0
    %634 = vmatprep.subr.bf16.mxu0 0
    %635 = vmatpush1.bf16.msra.mxu0 0
    %636 = vmatprep.subr.bf16.mxu0 0
    %637 = vmatpush1.bf16.msra.mxu0 0
    %638 = vmatprep.mubr.bf16.mxu0 0
    %639 = vmatmul.mubr.bf16.gmra.mrb[0].mxu0 %v604
    %v640 = vpop.f32.mrb[0].mxu0
    %v641 = vadd.f32 %v546, %v640
    %v642 = vpop.f32.mrb[0].mxu0
    %v643 = vadd.f32 %v550, %v642
    %v644 = vpop.f32.mrb[0].mxu0
    %v645 = vadd.f32 %v546, %v644
    %v646 = vpop.f32.mrb[0].mxu0
    %v647 = vadd.f32 %v550, %v646
    %648 = vdwg.mxu0
    %649 = vmatprep.subr.bf16.mxu0 %v590
    %650 = vmatpush1.bf16.msra.mxu0 %v589
    %651 = vmatprep.subr.bf16.mxu0 %v594
    %652 = vmatpush1.bf16.msra.mxu0 %v593
    %653 = vmatprep.subr.bf16.mxu0 0
    %654 = vmatpush1.bf16.msra.mxu0 0
    %655 = vmatprep.subr.bf16.mxu0 0
    %656 = vmatpush1.bf16.msra.mxu0 0
    %657 = vmatprep.subr.bf16.mxu0 0
    %658 = vmatpush1.bf16.msra.mxu0 0
    %659 = vmatprep.subr.bf16.mxu0 0
    %660 = vmatpush1.bf16.msra.mxu0 0
    %661 = vmatprep.subr.bf16.mxu0 0
    %662 = vmatpush1.bf16.msra.mxu0 0
    %663 = vmatprep.subr.bf16.mxu0 0
    %664 = vmatpush1.bf16.msra.mxu0 0
    %665 = vmatprep.subr.bf16.mxu0 0
    %666 = vmatpush1.bf16.msra.mxu0 0
    %667 = vmatprep.subr.bf16.mxu0 0
    %668 = vmatpush1.bf16.msra.mxu0 0
    %669 = vmatprep.subr.bf16.mxu0 0
    %670 = vmatpush1.bf16.msra.mxu0 0
    %671 = vmatprep.subr.bf16.mxu0 0
    %672 = vmatpush1.bf16.msra.mxu0 0
    %673 = vmatprep.subr.bf16.mxu0 0
    %674 = vmatpush1.bf16.msra.mxu0 0
    %675 = vmatprep.subr.bf16.mxu0 0
    %676 = vmatpush1.bf16.msra.mxu0 0
    %677 = vmatprep.subr.bf16.mxu0 0
    %678 = vmatpush1.bf16.msra.mxu0 0
    %679 = vmatprep.subr.bf16.mxu0 0
    %680 = vmatpush1.bf16.msra.mxu0 0
    %681 = vmatprep.mubr.bf16.mxu0 0
    %682 = vmatmul.mubr.bf16.gmra.mrb[0].mxu0 %v604
    %v683 = vpop.f32.mrb[0].mxu0
    %v684 = vadd.f32 %v554, %v683
    %v685 = vpop.f32.mrb[0].mxu0
    %v686 = vadd.f32 %v558, %v685
    %v687 = vpop.f32.mrb[0].mxu0
    %v688 = vadd.f32 %v554, %v687
    %v689 = vpop.f32.mrb[0].mxu0
    %v690 = vadd.f32 %v558, %v689
    %691 = vdwg.mxu0
    %v692 = vsub.f32 0.0, %v641
    %v693 = vsub.f32 0.0, %v643
    %v694 = vsub.f32 0.0, %v684
    %v695 = vsub.f32 0.0, %v686
    %v696 = vsub.f32 0.0, %v645
    %v697 = vsub.f32 0.0, %v647
    %v698 = vsub.f32 0.0, %v688
    %v699 = vsub.f32 0.0, %v690
    %v700 = vmul.f32 %v692, 1.442695
    %v701 = vpow.pop %v700
    %v702 = vmul.f32 %v693, 1.442695
    %v703 = vpow.pop %v702
    %v704 = vmul.f32 %v694, 1.442695
    %v705 = vpow.pop %v704
    %v706 = vmul.f32 %v695, 1.442695
    %v707 = vpow.pop %v706
    %v708 = vmul.f32 %v696, 1.442695
    %v709 = vpow.pop %v708
    %v710 = vmul.f32 %v697, 1.442695
    %v711 = vpow.pop %v710
    %v712 = vmul.f32 %v698, 1.442695
    %v713 = vpow.pop %v712
    %v714 = vmul.f32 %v699, 1.442695
    %v715 = vpow.pop %v714
    %v716 = vadd.f32 %v701, 1.0
    %v717 = vadd.f32 %v703, 1.0
    %v718 = vadd.f32 %v705, 1.0
    %v719 = vadd.f32 %v707, 1.0
    %v720 = vadd.f32 %v709, 1.0
    %v721 = vadd.f32 %v711, 1.0
    %v722 = vadd.f32 %v713, 1.0
    %v723 = vadd.f32 %v715, 1.0
    %v724 = vrcp.pop %v716
    %v725 = vrcp.pop %v717
    %v726 = vrcp.pop %v718
    %v727 = vrcp.pop %v719
    %v728 = vrcp.pop %v720
    %v729 = vrcp.pop %v721
    %v730 = vrcp.pop %v722
    %v731 = vrcp.pop %v723
    %v732 = vadd.f32 %v725, %v726
    %v733 = vadd.f32 %v729, %v730
    %v734 = vmul.f32 %v732, 0.5
    %v735 = vmul.f32 %v733, 0.5
    %v736 = vmul.f32 %v727, %v734
    %v737 = vmul.f32 %v731, %v735
    %v738 = vmax.f32 %v736, 1e-06
    %v739 = vmax.f32 %v737, 1e-06
    %v740 = vmin.f32 %v738, 0.999999
    %v741 = vmin.f32 %v739, 0.999999
    %v742 = vlog2.pop %v740
    %v743 = vmul.f32 %v742, 0.6931472
    %v744 = vlog2.pop %v741
    %v745 = vmul.f32 %v744, 0.6931472
    %v746 = vld [vmem:[%s2] sm:$0xf]
    %v747 = vld [vmem:[%s2 + $0x4] sm:$0xf]
    %v748 = vunpack.c.l.bf16 %v746
    %v749 = vunpack.c.l.bf16 %v747
    %v750 = vmul.f32 %v743, %v748
    %v751 = vmul.f32 %v745, %v749
    %v752 = vsub.f32 1.0, %v740
    %v753 = vsub.f32 1.0, %v741
    %v754 = vlog2.pop %v752
    %v755 = vmul.f32 %v754, 0.6931472
    %v756 = vlog2.pop %v753
    %v757 = vmul.f32 %v756, 0.6931472
    %v758 = vld [vmem:[%s3] sm:$0xf]
    %v759 = vld [vmem:[%s3 + $0x4] sm:$0xf]
    %v760 = vunpack.c.l.bf16 %v758
    %v761 = vunpack.c.l.bf16 %v759
    %v762 = vmul.f32 %v755, %v760
    %v763 = vmul.f32 %v757, %v761
    %v764 = vadd.f32 %v750, %v762
    %v765 = vadd.f32 %v751, %v763
    %766 = vadd.xlane.f32.xlu0 %v764
    %v767 = vpop.xlane.xlu0 %766
    %768 = vadd.xlane.f32.xlu0 %v765
    %v769 = vpop.xlane.xlu0 %768
    %v770 = vadd.f32 %v767, %v769
    %v771 = vrot.slane %v770, 4
    %v772 = vadd.f32 %v770, %v771
    %v773 = vrot.slane %v772, 2
    %v774 = vadd.f32 %v772, %v773
    %v775 = vrot.slane %v774, 1
    %v776 = vadd.f32 %v774, %v775
    %778 = vset.pattern.permute.xlu0 0
    %779 = vperm.xlu0 %778, %v724
    %v780 = vpop.permute.xlu0 %779
    %783 = vset.pattern.permute.xlu0 0
    %784 = vperm.xlu0 %783, %v728
    %v785 = vpop.permute.xlu0 %784
    %v787 = vrcp.pop %v780
    %v788 = vmul.f32 %v724, %v787
    %v789 = vrcp.pop %v785
    %v790 = vmul.f32 %v728, %v789
    %791 = vst.msk [vmem:[#allocation4] sm:$0xff] %vm62, %v788
    %792 = vst.msk [vmem:[#allocation4 + $0x8] sm:$0xff] %vm62, %v790
    %s793 = smul.u32 0, 16
    %v794 = vlaneseq
    %v795 = vshrl.u32 %v794, 7
    %v796 = vadd.s32 %v795, 8
    %v797 = vstv %s793
    %v798 = vadd.s32 %v797, %v795
    %v799 = vadd.s32 %v797, %v796
    %v800 = vlaneseq
    %v801 = vand.u32 %v800, 127
    %vm802 = vcmp.lt.s32.totalorder %v798, 4
    %vm803 = vcmp.lt.s32.totalorder %v799, 4
    %vm804 = vcmp.lt.s32.totalorder %v801, 10
    %vm805 = vmand %vm802, %vm804
    %vm806 = vmand %vm803, %vm804
    %v807 = vld [vmem:[%s1] sm:$0xff]
    %v808 = vld [vmem:[%s1 + $0x8] sm:$0xff]
    %v809 = vsub.f32 %v807, %v788
    %v810 = vsub.f32 %v808, %v790
    %v811 = vrcp.pop %v807
    %v812 = vrcp.pop %v808
    %v813 = vmul.f32 %v809, %v811
    %v814 = vmul.f32 %v810, %v812
    %v815 = vand.u32 2147483647, %v813
    %v816 = vand.u32 2147483647, %v814
    %v817 = vsel %vm805, %v815, 0.0
    %v818 = vsel %vm806, %v816, 0.0
    %v819 = vsel %vm62, %v817, 0.0
    %820 = vadd.xlane.f32.xlu0 %v819
    %v821 = vpop.xlane.xlu0 %820
    %v822 = vsel %vm62, %v818, 0.0
    %823 = vadd.xlane.f32.xlu0 %v822
    %v824 = vpop.xlane.xlu0 %823
    %v825 = vadd.f32 %v821, %v824
    %v826 = vrot.slane %v825, 4
    %v827 = vadd.f32 %v825, %v826
    %v828 = vrot.slane %v827, 2
    %v829 = vadd.f32 %v827, %v828
    %v830 = vrot.slane %v829, 1
    %v831 = vadd.f32 %v829, %v830
    %vm832 = vcmp.eq.s32.totalorder %v795, 0
    %vm833 = vcmp.eq.s32.totalorder %v801, 0
    %vm834 = vmand %vm832, %vm833
    %v835 = vsub.f32 0.0, %v776
    %v836 = vsel %vm834, %v835, 0.0
    %vm837 = vcmp.eq.s32.totalorder %v801, 1
    %vm838 = vmand %vm832, %vm837
    %v839 = vsel %vm838, %v831, 0.0
    %v840 = vadd.f32 %v836, %v839
    %841 = vst [vmem:[#allocation2] sm:$0xff] %v840
    // Predicated region
    $region42: #{tpu_custom_call.1} parent=1 // pred_check
      _
    $region43: #{tpu_custom_call.1} parent=1 // pred_check_branch
      %843 = sbr.rel (0) target = $region45
    $region44: #{tpu_custom_call.1} parent=1 // pred_region
      %s845 = ssub.s32 128, 128
      %846 = vsyncadd [#allocation3], %s845
      %s848 = sshll.u32 [#allocation2], 4
      %s849 = int_to_ptr.vmem [resolvable:$true] %s848
      %851 = dma.vmem_to_hbm [thread:$0]  %s849, 128, %s10, [#allocation3]
    $region45: #{tpu_custom_call.1} parent=1 // pred_fallthru
      _
    // Predicated region
    $region46: #{tpu_custom_call.1} parent=1 // pred_check
      _
    $region47: #{tpu_custom_call.1} parent=1 // pred_check_branch
      %853 = sbr.rel (0) target = $region49
    $region48: #{tpu_custom_call.1} parent=1 // pred_region
      %s855 = ssub.s32 256, 256
      %856 = vsyncadd [#allocation5], %s855
      %s857 = sshll.u32 [#allocation4], 4
      %s858 = int_to_ptr.vmem [resolvable:$true] %s857
      %863 = dma.vmem_to_hbm [thread:$0]  %s858, 256, %s11, [#allocation5], 128, 128, 8
    $region49: #{tpu_custom_call.1} parent=1 // pred_fallthru
      _
    // Predicated region
    $region50: #{tpu_custom_call.1} parent=1 // pred_check
      _
    $region51: #{tpu_custom_call.1} parent=1 // pred_check_branch
      %865 = sbr.rel (0) target = $region53
    $region52: #{tpu_custom_call.1} parent=1 // pred_region
      %866 = dma.done [#allocation3], 128
    $region53: #{tpu_custom_call.1} parent=1 // pred_fallthru
      _
    // Predicated region
    $region54: #{tpu_custom_call.1} parent=1 // pred_check
      _
    $region55: #{tpu_custom_call.1} parent=1 // pred_check_branch
      %868 = sbr.rel (0) target = $region57
    $region56: #{tpu_custom_call.1} parent=1 // pred_region
      %869 = dma.done [#allocation5], 256
    $region57: #{tpu_custom_call.1} parent=1 // pred_fallthru
      _
    %870 = vsyncpa [#allocation3], 1
    %871 = vsyncpa [#allocation5], 1

</llo_original>
